<compile_context>
chip_gen: v6e
topology: v6e:2x2x1
jax: 0.10.0
libtpu: 0.0.40
codegen_flags: <defaults>
</compile_context>

<pallas_src>
import functools

import jax
import jax.numpy as jnp
from jax import lax
from jax.experimental import pallas as pl
from jax.experimental.pallas import tpu as pltpu


def _ru(x, m):
    return ((x + m - 1) // m) * m


# --------------------------- Pallas kernel -----------------------------------

def _time2vec_kernel(x_ref, w_ref, b_ref, o_ref, *, linear_shape, in_shape):
    """y = x @ w + b; identity on the first `linear_shape` output columns
    (linear head), sin(.) on the remaining columns (sine head)."""
    x = x_ref[...].astype(jnp.float32)          # (tm, K)
    w = w_ref[...].astype(jnp.float32)          # (K,  N)
    b = b_ref[...].astype(jnp.float32)          # (1,  N)

    if in_shape <= 8:
        # VPU path: K is far too small to feed the MXU usefully; an unrolled
        # broadcast outer product is a handful of vreg ops and needs no K pad.
        y = b
        for k in range(in_shape):
            y = y + x[:, k:k + 1] * w[k:k + 1, :]
    else:
        y = jnp.dot(x, w, preferred_element_type=jnp.float32) + b

    # Identity on the linear head, sin(.) on the sine head.
    # TODO(synk): for wide out_shape, lane-align the two heads separately so sin
    # is only evaluated on sine-head vregs (saves ~25-30% VALU work); at
    # out_shape=16 (one vreg) the select is negligible.
    col = lax.broadcasted_iota(jnp.int32, y.shape, 1)
    o_ref[...] = jnp.where(col < linear_shape, y, jnp.sin(y)).astype(o_ref.dtype)


# --------------------------- Parameters --------------------------------------

def init_time2vec(key, in_shape, out_shape):
    """Deterministic init mimicking torch.nn.Linear defaults.
    Weights are stored (in, out) so the kernel computes x @ w directly."""
    linear_shape = out_shape // 4
    sine_shape = out_shape - linear_shape
    k0, k1, k2, k3 = jax.random.split(key, 4)
    bound = 1.0 / (in_shape ** 0.5)
    w_lin = jax.random.uniform(k0, (in_shape, linear_shape), jnp.float32, -bound, bound)
    b_lin = jax.random.uniform(k1, (linear_shape,), jnp.float32, -bound, bound)
    w_sin = jax.random.uniform(k2, (in_shape, sine_shape), jnp.float32, -bound, bound)
    b_sin = jax.random.uniform(k3, (sine_shape,), jnp.float32, -bound, bound)
    return dict(w_lin=w_lin, b_lin=b_lin, w_sin=w_sin, b_sin=b_sin,
                in_shape=in_shape, out_shape=out_shape, linear_shape=linear_shape)


def prepare_time2vec(params):
    """Fold the two heads into one (in, out) weight / (1, out) bias and cast once.
    No padding needed any more: all blocks use full-dim extents."""
    w = jnp.concatenate([params["w_lin"], params["w_sin"]], axis=1).astype(jnp.float32)
    b = jnp.concatenate([params["b_lin"], params["b_sin"]], axis=0)
    b = b.astype(jnp.float32).reshape(1, -1)
    return dict(w=w, b=b, in_shape=params["in_shape"], out_shape=params["out_shape"],
                linear_shape=params["linear_shape"])


# --------------------------- Forward ------------------------------------------

def time2vec_forward(prepared, X, *, out_dtype=jnp.float32, min_pallas_batch=0):
    """Pallas Time2Vec forward: concat([X@W_lin+b_lin, sin(X@W_sin+b_sin)], axis=1)."""
    if X.ndim == 3:
        if X.shape[1] != 1:
            raise ValueError(
                f"Time2Vec only squeezes a singleton middle dim, got {X.shape}")
        X = X[:, 0, :]
    if X.ndim != 2:
        raise ValueError(f"expected 2-D (batch, in_shape) input, got shape {X.shape}")

    B, K = X.shape
    in_shape = prepared["in_shape"]
    out_shape = prepared["out_shape"]
    linear_shape = prepared["linear_shape"]
    if K != in_shape:
        raise ValueError(f"input feature dim {K} != in_shape {in_shape}")

    if B < min_pallas_batch:
        # Tiny-batch fallback: launch overhead exceeds the compute; let XLA fuse
        # the op into its neighbours instead.
        y = X.astype(jnp.float32) @ prepared["w"] + prepared["b"]
        te = jnp.concatenate([y[:, :linear_shape], jnp.sin(y[:, linear_shape:])], axis=1)
        return te.astype(out_dtype)

    # ---- M tiling -------------------------------------------------------
    if B <= 512:
        tm = B                          # one full-dim block (legal for any B)
    else:
        # >= 2 "parallel" blocks so v7x's second TensorCore gets work; <= 1024
        # rows/block keeps double-buffered VMEM tiny on v5e/v6e/v7x alike.
        tm = min(1024, _ru(pl.cdiv(B, 2), 8))
    grid_m = pl.cdiv(B, tm)             # ragged tails handled by masked writes

    sine_shape = out_shape - linear_shape
    cost = pl.CostEstimate(
        flops=2 * B * K * out_shape + B * out_shape,
        transcendentals=B * sine_shape,
        bytes_accessed=4 * (B * K + K * out_shape + out_shape)
        + B * out_shape * jnp.dtype(out_dtype).itemsize,
    )

    return pl.pallas_call(
        functools.partial(_time2vec_kernel,
                          linear_shape=linear_shape, in_shape=in_shape),
        out_shape=jax.ShapeDtypeStruct((B, out_shape), out_dtype),
        grid=(grid_m,),
        in_specs=[
            pl.BlockSpec((tm, K), lambda i: (i, 0)),          # X rows (unpadded)
            pl.BlockSpec((K, out_shape), lambda i: (0, 0)),   # fused weight
            pl.BlockSpec((1, out_shape), lambda i: (0, 0)),   # fused bias
        ],
        out_specs=pl.BlockSpec((tm, out_shape), lambda i: (i, 0)),
        compiler_params=pltpu.CompilerParams(
            dimension_semantics=("parallel",),
            vmem_limit_bytes=32 * 1024 * 1024),
        cost_estimate=cost,
    )(X.astype(jnp.float32), prepared["w"], prepared["b"])


def time2vec_reference(params, X):
    """Pure-JAX reference of the PyTorch module."""
    if X.ndim == 3 and X.shape[1] == 1:
        X = X[:, 0, :]
    te_lin = X @ params["w_lin"] + params["b_lin"]
    te_sin = jnp.sin(X @ params["w_sin"] + params["b_sin"])
    return jnp.concatenate([te_lin, te_sin], axis=1)


# --------------------------------- Main ---------------------------------------

if __name__ == "__main__":
    key = jax.random.PRNGKey(0)
    kp, kx, kx2 = jax.random.split(key, 3)

    # Time2Vec(1, 16) as instantiated in models_GI.py; small batch.
    in_shape, out_shape, B = 1, 16, 8
    params = init_time2vec(kp, in_shape, out_shape)
    prepared = prepare_time2vec(params)      # fold weights once, outside forward

    X = jax.random.normal(kx, (B, in_shape), jnp.float32)

    fwd = jax.jit(functools.partial(time2vec_forward, prepared))
    out = jax.block_until_ready(fwd(X))
    ref = time2vec_reference(params, X)

    assert out.shape == (B, out_shape), out.shape
    assert bool(jnp.all(jnp.isfinite(out)))
    assert bool(jnp.allclose(out, ref, atol=1e-5, rtol=1e-5)), \
        float(jnp.max(jnp.abs(out - ref)))

    # Squeeze path: 3-D input with a singleton middle dim, as in the reference.
    out3 = jax.block_until_ready(fwd(X[:, None, :]))
    assert bool(jnp.allclose(out3, ref, atol=1e-5, rtol=1e-5))

    # Larger batch: exercises the multi-block "parallel" M tiling (2 x 768 rows).
    Bl = 1536
    Xl = jax.random.normal(kx2, (Bl, in_shape), jnp.float32)
    outl = jax.block_until_ready(fwd(Xl))
    refl = time2vec_reference(params, Xl)
    assert outl.shape == (Bl, out_shape), outl.shape
    assert bool(jnp.allclose(outl, refl, atol=1e-5, rtol=1e-5)), \
        float(jnp.max(jnp.abs(outl - refl)))

    print("KERNEL_OK")
</pallas_src>

<mosaic_0001>
module attributes {stable_mosaic.version = 11 : i64} {
  func.func @_time2vec_kernel(%arg0: i32, %arg1: memref<8x1xf32, #tpu.memory_space<vmem>>, %arg2: memref<1x16xf32, #tpu.memory_space<vmem>>, %arg3: memref<1x16xf32, #tpu.memory_space<vmem>>, %arg4: memref<8x16xf32, #tpu.memory_space<vmem>>) attributes {dimension_semantics = [#tpu.dimension_semantics<parallel>], iteration_bounds = array<i64: 1>, scalar_prefetch = 0 : i64, scratch_operands = 0 : i64, tpu.core_type = #tpu.core_type<tc>, window_params = [{transform_indices = @transform_0, window_bounds = array<i64: 8, 1>}, {pipeline_mode = #tpu.pipeline_mode<synchronous>, transform_indices = @transform_1, window_bounds = array<i64: 1, 16>}, {pipeline_mode = #tpu.pipeline_mode<synchronous>, transform_indices = @transform_2, window_bounds = array<i64: 1, 16>}, {transform_indices = @transform_3, window_bounds = array<i64: 8, 16>}]} {
    %c0 = arith.constant 0 : index
    %c0_0 = arith.constant 0 : index
    %0 = vector.load %arg1[%c0, %c0_0] : memref<8x1xf32, #tpu.memory_space<vmem>>, vector<8x1xf32>
    %c0_1 = arith.constant 0 : index
    %c0_2 = arith.constant 0 : index
    %1 = vector.load %arg2[%c0_1, %c0_2] : memref<1x16xf32, #tpu.memory_space<vmem>>, vector<1x16xf32>
    %c0_3 = arith.constant 0 : index
    %c0_4 = arith.constant 0 : index
    %2 = vector.load %arg3[%c0_3, %c0_4] : memref<1x16xf32, #tpu.memory_space<vmem>>, vector<1x16xf32>
    %3 = vector.broadcast %0 : vector<8x1xf32> to vector<8x16xf32>
    %4 = vector.broadcast %1 : vector<1x16xf32> to vector<8x16xf32>
    %5 = arith.mulf %3, %4 : vector<8x16xf32>
    %6 = vector.broadcast %2 : vector<1x16xf32> to vector<8x16xf32>
    %7 = arith.addf %6, %5 : vector<8x16xf32>
    %8 = tpu.iota {dimensions = array<i32: 1>} : vector<8x16xi32>
    %c4_i32 = arith.constant 4 : i32
    %9 = vector.broadcast %c4_i32 : i32 to vector<8x16xi32>
    %10 = arith.cmpi slt, %8, %9 : vector<8x16xi32>
    %11 = math.sin %7 : vector<8x16xf32>
    %12 = arith.select %10, %7, %11 : vector<8x16xi1>, vector<8x16xf32>
    %c0_5 = arith.constant 0 : index
    %c0_6 = arith.constant 0 : index
    %13 = vector.load %arg4[%c0_5, %c0_6] : memref<8x16xf32, #tpu.memory_space<vmem>>, vector<8x16xf32>
    tpu.vector_store %arg4[%c0_5, %c0_6], %12 {strides = array<i32>} : memref<8x16xf32, #tpu.memory_space<vmem>>, vector<8x16xf32>,
    return
  }
  func.func @transform_0(%arg0: i32) -> (i32, i32) {
    %c0_i32 = arith.constant 0 : i32
    %c0_i32_0 = arith.constant 0 : i32
    return %arg0, %c0_i32 : i32, i32
  }
  func.func @transform_1(%arg0: i32) -> (i32, i32) {
    %c0_i32 = arith.constant 0 : i32
    %c0_i32_0 = arith.constant 0 : i32
    %c0_i32_1 = arith.constant 0 : i32
    return %c0_i32, %c0_i32_0 : i32, i32
  }
  func.func @transform_2(%arg0: i32) -> (i32, i32) {
    %c0_i32 = arith.constant 0 : i32
    %c0_i32_0 = arith.constant 0 : i32
    %c0_i32_1 = arith.constant 0 : i32
    return %c0_i32, %c0_i32_0 : i32, i32
  }
  func.func @transform_3(%arg0: i32) -> (i32, i32) {
    %c0_i32 = arith.constant 0 : i32
    %c0_i32_0 = arith.constant 0 : i32
    return %arg0, %c0_i32 : i32, i32
  }
}

</mosaic_0001>

<llo_original>
// kernel: time2vec_forward.1
$region0: #{time2vec_forward.1}
  #allocation0 [shape = 'u32[]', space=smem, size = 0x4, offset = 0x4, fixed_abs, tag = 'smem constant byte address 0x4 - core index']
  #allocation1 [shape = 'u32[144,128]{1,0:T(1,128)}', space=vmem, size = 0x12000, scoped, tag = 'internal scratch']
  %s0 = inlined_call_operand.vmem [shape: f32[8,1], index: 0, kind: input, shape index: {}]
  %s1 = inlined_call_operand.vmem [shape: f32[1,16], index: 1, kind: input, shape index: {}]
  %s2 = inlined_call_operand.vmem [shape: f32[1,16], index: 2, kind: input, shape index: {}]
  %s3 = inlined_call_operand.hbm [shape: f32[8,16], index: 3, kind: output, shape index: {}]
  %s4 = sld [smem:[#allocation0]]
  $region22: #{time2vec_forward.1} parent=0
    _
  %s6 = ssub.s32 1, %s4
  %s7 = scalar_select 0, %s6, %s4
  $region1: #{time2vec_forward.1} parent=0
    #allocation2 [shape = 'u8[4096]{0}', space=vmem, size = 0x1000, scoped, tag = 'output window, operand 0, single buffered']
    #allocation3 [shape = 's32[1]{0}', space=sflag, size = 0x4, scoped, tag = 'scoped memory for time2vec_forward.1']
    %8 = vsyncpa [#allocation3], 0
    // Predicated region
    $region2: #{time2vec_forward.1} parent=1 // pred_check
      _
    $region3: #{time2vec_forward.1} parent=1 // pred_check_branch
      %10 = sbr.rel (0) target = $region5
    $region4: #{time2vec_forward.1} parent=1 // pred_region
      _
    $region5: #{time2vec_forward.1} parent=1 // pred_fallthru
      _
    // Predicated region
    $region6: #{time2vec_forward.1} parent=1 // pred_check
      _
    $region7: #{time2vec_forward.1} parent=1 // pred_check_branch
      %12 = sbr.rel (0) target = $region9
    $region8: #{time2vec_forward.1} parent=1 // pred_region
      _
    $region9: #{time2vec_forward.1} parent=1 // pred_fallthru
      _
    // Predicated region
    $region10: #{time2vec_forward.1} parent=1 // pred_check
      _
    $region11: #{time2vec_forward.1} parent=1 // pred_check_branch
      %14 = sbr.rel (0) target = $region13
    $region12: #{time2vec_forward.1} parent=1 // pred_region
      _
    $region13: #{time2vec_forward.1} parent=1 // pred_fallthru
      _
    %v15 = vld [vmem:[%s0] sm:$0xff]
    %v16 = vld [vmem:[%s1] sm:$0x1]
    %v17 = vld [vmem:[%s2] sm:$0x1]
    %19 = vset.pattern.permute.xlu0 0
    %20 = vperm.xlu0 %19, %v15
    %v21 = vpop.permute.xlu0 %20
    %v24 = vlaneseq
    %v25 = vshrl.u32 %v24, 7
    %v26 = vsub.s32 0, %v25
    %v27 = vrot.slane %v16, %v26
    %v29 = vmul.f32 %v21, %v27
    %v31 = vlaneseq
    %v32 = vshrl.u32 %v31, 7
    %v33 = vsub.s32 0, %v32
    %v34 = vrot.slane %v17, %v33
    %v36 = vadd.f32 %v34, %v29
    %v37 = vlaneseq
    %v38 = vand.u32 %v37, 127
    %vm39 = vcmp.lt.s32.totalorder %v38, 4
    %v40 = vand.u32 2147483647, %v36
    %vm41 = vcmp.le.f32.partialorder %v40, 0.7853982
    %vm42 = vcmp.lt.s32.totalorder %v36, 0
    %v43 = vand.u32 %v36, 2139095040
    %v44 = vshrl.u32 %v43, 23
    %v45 = vsub.s32 %v44, 127
    %v46 = vand.u32 2147483647, %v36
    %v47 = vand.u32 %v46, 8388607
    %v48 = vor.u32 %v47, 8388608
    %v49 = vsub.s32 0, %v48
    %v50 = vadd.s32 %v45, 1
    %vm51 = vcmp.gt.s32.totalorder %v50, 0
    %v52 = vsel %vm51, %v50, 0
    %v53 = vshrl.u32 %v52, 5
    %v54 = vand.u32 %v52, 31
    %v55 = vsub.s32 32, %v54
    %v56 = vshrl.u32 683565275, %v55
    %v57 = vshll.u32 683565275, %v54
    %v58 = vshrl.u32 2475754826, %v55
    %v59 = vor.u32 %v57, %v58
    %v60 = vshll.u32 2475754826, %v54
    %v61 = vshrl.u32 2131351028, %v55
    %v62 = vor.u32 %v60, %v61
    %v63 = vshll.u32 2131351028, %v54
    %v64 = vshrl.u32 2102212464, %v55
    %v65 = vor.u32 %v63, %v64
    %v66 = vshll.u32 2102212464, %v54
    %v67 = vshrl.u32 920167782, %v55
    %v68 = vor.u32 %v66, %v67
    %v69 = vshll.u32 920167782, %v54
    %v70 = vshrl.u32 1326507024, %v55
    %v71 = vor.u32 %v69, %v70
    %vm72 = vcmp.lt.s32.totalorder %v53, 1
    %vm73 = vcmp.lt.s32.totalorder %v53, 2
    %vm74 = vcmp.lt.s32.totalorder %v53, 3
    %vm75 = vcmp.lt.s32.totalorder %v53, 4
    %v76 = vsel %vm72, %v56, %v59
    %v77 = vsel %vm75, %v65, 2102212464
    %v78 = vsel %vm74, %v62, %v77
    %v79 = vsel %vm73, %v76, %v78
    %v80 = vsel %vm72, %v59, %v62
    %v81 = vsel %vm75, %v68, 920167782
    %v82 = vsel %vm74, %v65, %v81
    %v83 = vsel %vm73, %v80, %v82
    %v84 = vsel %vm72, %v62, %v65
    %v85 = vsel %vm75, %v71, 1326507024
    %v86 = vsel %vm74, %v68, %v85
    %v87 = vsel %vm73, %v84, %v86
    %v88 = vshll.u32 %v48, 8
    %v89 = vmul.u32.u64.compose %v88, %v87
    %v90 = vextract.low.u32 %v89
    %v91 = vextract.high.u32 %v89
    %v92 = vmul.u32.u64.compose %v88, %v83
    %v93 = vextract.low.u32 %v92
    %v94 = vextract.high.u32 %v92
    %v95 = vmul.u32 %v88, %v79
    %v96 = vadd.s32 %v91, %v93
    %vm97 = vc.u32 %v91, %v93
    %v98 = vadd.s32 %v94, 1
    %v99 = vsel %vm97, %v98, %v94
    %v100 = vadd.s32 %v95, %v99
    %v101 = vadd.s32 %v100, 536870912
    %v102 = vshrl.u32 %v101, 30
    %v103 = vshll.u32 %v102, 30
    %v104 = vsub.s32 %v100, %v103
    %vm105 = vcmp.lt.s32.totalorder %v104, 0
    %v106 = vsub.s32 0, %v104
    %v107 = vsel %vm105, %v106, %v104
    %v108 = vclz %v107
    %v109 = vsub.s32 %v108, 2
    %vm110 = vcmp.gt.s32.totalorder 0, %v109
    %v111 = vsel %vm110, 0, %v109
    %v112 = vsub.s32 32, %v111
    %v113 = vshll.u32 %v104, %v111
    %v114 = vshrl.u32 %v96, %v112
    %v115 = vor.u32 %v113, %v114
    %v116 = vsub.s32 4294967266, %v111
    %v117 = vadd.s32 %v116, 127
    %v118 = vshll.u32 %v117, 23
    %v119 = vor.u32 4788187, %v118
    %v120 = vand.u32 2147483647, %v119
    %v122 = vcvt.s32.f32 %v115
    %v123 = vmul.f32 %v122, %v120
    %v124 = vxor.u32 %v123, 2147483648
    %v125 = vsel %vm42, %v124, %v123
    %v126 = vsub.s32 4, %v102
    %v127 = vsel %vm42, %v126, %v102
    %v128 = vsel %vm41, %v36, %v125
    %v129 = vsel %vm41, 0, %v127
    %v130 = vcosq.f32.pop %v128
    %v131 = vsinq.f32.pop %v128
    %vm132 = vweird.f32 %v36
    %v133 = vadd.s32 %v129, 3
    %v134 = vand.u32 %v133, 3
    %vm135 = vcmp.lt.s32.totalorder %v134, 2
    %vm136 = vcmp.eq.s32.totalorder %v134, 0
    %v137 = vxor.u32 %v131, 2147483648
    %v138 = vsel %vm136, %v130, %v137
    %vm139 = vcmp.eq.s32.totalorder %v134, 2
    %v140 = vxor.u32 %v130, 2147483648
    %v141 = vsel %vm139, %v140, %v131
    %v142 = vsel %vm135, %v138, %v141
    %v143 = vsel %vm132, nan, %v142
    %v144 = vsel %vm39, %v36, %v143
    %vm145 = vcmask 130048
    %146 = vst.msk [vmem:[#allocation2] sm:$0xff] %vm145, %v144
    // Predicated region
    $region14: #{time2vec_forward.1} parent=1 // pred_check
      _
    $region15: #{time2vec_forward.1} parent=1 // pred_check_branch
      %148 = sbr.rel (0) target = $region17
    $region16: #{time2vec_forward.1} parent=1 // pred_region
      %s150 = ssub.s32 128, 128
      %151 = vsyncadd [#allocation3], %s150
      %s153 = sshll.u32 [#allocation2], 4
      %s154 = int_to_ptr.vmem [resolvable:$true] %s153
      %156 = dma.vmem_to_hbm [thread:$0]  %s154, 128, %s3, [#allocation3]
    $region17: #{time2vec_forward.1} parent=1 // pred_fallthru
      _
    // Predicated region
    $region18: #{time2vec_forward.1} parent=1 // pred_check
      _
    $region19: #{time2vec_forward.1} parent=1 // pred_check_branch
      %158 = sbr.rel (0) target = $region21
    $region20: #{time2vec_forward.1} parent=1 // pred_region
      %159 = dma.done [#allocation3], 128
    $region21: #{time2vec_forward.1} parent=1 // pred_fallthru
      _
    %160 = vsyncpa [#allocation3], 1

</llo_original>
